<compile_context>
chip_gen: v6e
topology: v6e:2x2x1
jax: 0.10.0
libtpu: 0.0.40
codegen_flags: <defaults>
</compile_context>

<pallas_src>
import functools

import jax
import jax.numpy as jnp
from jax.experimental import pallas as pl
from jax.experimental.pallas import tpu as pltpu


def _round_up(x, m):
    return (x + m - 1) // m * m


# ---------------------------------------------------------------------------
# Fused kernel: in-kernel tap gather + matmul + BN/bias + ReLU + interior mask
# ---------------------------------------------------------------------------
def _conv_tap_kernel(*refs, num_in, taps, plane_off, m_core, relu):
    # refs = [x_0..x_{num_in-1}, w_0..w_{num_in-1}, scale, shift, mask, out]
    x_refs = refs[:num_in]
    w_refs = refs[num_in:2 * num_in]
    scale_ref, shift_ref, mask_ref, o_ref = refs[2 * num_in:2 * num_in + 4]

    co_t = o_ref.shape[1]
    acc = jnp.zeros((co_t, m_core), jnp.float32)
    for xi in range(num_in):
        x_ref = x_refs[xi]
        w_ref = w_refs[xi]
        for t, off in enumerate(taps):
            # Statically shifted lane slice of the resident per-image row (the tap).
            xt = x_ref[0, :, pl.ds(plane_off + off, m_core)]
            acc = acc + jnp.dot(w_ref[t], xt, preferred_element_type=jnp.float32)

    y = acc * scale_ref[...] + shift_ref[...]
    if relu:
        y = jnp.maximum(y, 0.0)
    y = y * mask_ref[...]                       # keep halo/pad positions exactly zero
    o_ref[0, :, pl.ds(plane_off, m_core)] = y.astype(o_ref.dtype)

    left = plane_off
    right = o_ref.shape[2] - plane_off - m_core
    if left > 0:
        o_ref[0, :, pl.ds(0, left)] = jnp.zeros((co_t, left), o_ref.dtype)
    if right > 0:
        o_ref[0, :, pl.ds(plane_off + m_core, right)] = jnp.zeros((co_t, right), o_ref.dtype)


def _fused_conv(x_slabs, w_groups, scale, shift, mask, *, taps, plane_off,
                m_core, relu, out_dtype, vmem_budget=40 << 20):
    """act(scale * (sum_g W_g (x)conv x_g) + shift) * mask in padded-plane layout.

    x_slabs[g]: (N, Cp_g, Mrow) channels-major, per-image flattened padded plane.
    w_groups[g]: (T, Cout, Cpart_g) tap-major weights (Cpart padded here to Cp_g).
    """
    n = x_slabs[0].shape[0]
    m_row = x_slabs[0].shape[2]
    num_in = len(x_slabs)
    n_taps = len(taps)
    cout = w_groups[0].shape[1]
    cp_list = [xs.shape[1] for xs in x_slabs]
    bytes_per = jnp.dtype(out_dtype).itemsize

    # --- Cout tiling from an explicit VMEM budget (v5e/v6e/v7x safe) -------------
    cop0 = _round_up(cout, 8)

    def _est(ct):
        x_b = sum(cp * m_row for cp in cp_list) * bytes_per * 2      # double-buffered
        w_b = sum(n_taps * ct * cp for cp in cp_list) * bytes_per * 2
        o_b = ct * m_row * bytes_per * 2
        acc_b = ct * m_core * 4
        misc = m_core * 4 * 2 + 4 * ct * 4
        return x_b + w_b + o_b + acc_b + misc

    co_t = cop0
    while co_t > 8 and _est(co_t) > vmem_budget:
        co_t = _round_up(co_t // 2, 8)
    cop = _round_up(cop0, co_t)

    # --- pad weights / BN affine to the tiled channel counts ---------------------
    w_padded = []
    for wg, cp in zip(w_groups, cp_list):
        wg = jnp.pad(wg, ((0, 0), (0, cop - wg.shape[1]), (0, cp - wg.shape[2])))
        w_padded.append(wg.astype(out_dtype))
    scale = jnp.pad(scale.astype(jnp.float32).reshape(-1, 1), ((0, cop - cout), (0, 0)))
    shift = jnp.pad(shift.astype(jnp.float32).reshape(-1, 1), ((0, cop - cout), (0, 0)))
    mask = mask.astype(jnp.float32).reshape(1, m_core)

    in_specs = []
    for cp in cp_list:                                   # per-image rows, resident over Co
        in_specs.append(pl.BlockSpec((1, cp, m_row), lambda i, j: (i, 0, 0)))
    for cp in cp_list:                                   # tap-major weight slab per Co tile
        in_specs.append(pl.BlockSpec((n_taps, co_t, cp), lambda i, j: (0, j, 0)))
    in_specs += [
        pl.BlockSpec((co_t, 1), lambda i, j: (j, 0)),    # BN/bias scale
        pl.BlockSpec((co_t, 1), lambda i, j: (j, 0)),    # BN/bias shift
        pl.BlockSpec((1, m_core), lambda i, j: (0, 0)),  # interior mask (resident)
    ]
    out_specs = pl.BlockSpec((1, co_t, m_row), lambda i, j: (i, j, 0))

    kernel = functools.partial(
        _conv_tap_kernel, num_in=num_in, taps=tuple(int(t) for t in taps),
        plane_off=plane_off, m_core=m_core, relu=relu)

    vmem_limit = int(min(max(_est(co_t) + (8 << 20), 24 << 20), 64 << 20))
    return pl.pallas_call(
        kernel,
        out_shape=jax.ShapeDtypeStruct((n, cop, m_row), out_dtype),
        grid=(n, cop // co_t),
        in_specs=in_specs,
        out_specs=out_specs,
        compiler_params=pltpu.CompilerParams(
            dimension_semantics=("parallel", "parallel"),
            vmem_limit_bytes=vmem_limit),
    )(*x_slabs, *w_padded, scale, shift, mask)


# ---------------------------------------------------------------------------
# Layout helpers (one-time NCHW <-> padded-plane slab conversions)
# ---------------------------------------------------------------------------
def _to_plane_slab(x, *, cp, hp, wl, top, left, a, m_row):
    """(N, C, Hx, Wx) -> (N, cp, m_row): place x at rows [top, top+Hx), cols
    [left, left+Wx) of an (hp, wl) plane that starts at lane offset `a`."""
    n, c, hx, wx = x.shape
    xp = jnp.pad(x, ((0, 0), (0, cp - c),
                     (top, hp - top - hx), (left, wl - left - wx)))
    slab = xp.reshape(n, cp, hp * wl)
    return jnp.pad(slab, ((0, 0), (0, 0), (a, m_row - a - hp * wl)))


# ---------------------------------------------------------------------------
# Up forward
# ---------------------------------------------------------------------------
def up_forward(x1, x2, params, *, eps=1e-5):
    n, cin, h1, w1 = x1.shape
    _, c2_in, h, w = x2.shape
    c2 = cin // 2
    assert c2_in == c2
    dtype = x1.dtype

    blocks = params["blocks"]
    dils = [int(b["dilation"]) for b in blocks]
    g = max(dils)                                  # plane halo width (>= every layer's pad)
    hp = h + 2 * g
    wl = _round_up(w + 2 * g, 128)                 # lane row stride (multiple of 128)
    m_core = hp * wl
    halo = max(d * (wl + 1) for d in dils)         # max |flat tap offset|
    a = _round_up(halo, 128)                       # 128-aligned lane apron
    m_row = a + m_core + a

    # ---- 1) ConvTranspose2d(k=2, s=2): single-tap fused matmul -------------------
    m1 = _round_up(h1 * w1, 128)
    cinp = _round_up(cin, 8)
    x1_flat = jnp.pad(x1.reshape(n, cin, h1 * w1),
                      ((0, 0), (0, cinp - cin), (0, m1 - h1 * w1)))
    c4 = c2 * 4
    w_up = params["up_w"]                                      # (Cin, C2, 2, 2)
    w4 = w_up.transpose(1, 2, 3, 0).reshape(1, c4, cin)        # row = c*4 + r*2 + s
    shift4 = jnp.repeat(params["up_b"].astype(jnp.float32), 4)
    scale4 = jnp.ones((c4,), jnp.float32)
    mask1 = (jnp.arange(m1) < h1 * w1).astype(jnp.float32)
    y4 = _fused_conv([x1_flat], [w4], scale4, shift4, mask1,
                     taps=(0,), plane_off=0, m_core=m1, relu=False,
                     out_dtype=dtype)

    # 2x2 pixel interleave + centre pad (small one-pass XLA relayout; see TODO above).
    u = y4[:, :c4, :h1 * w1].reshape(n, c2, 2, 2, h1, w1)
    x1u = u.transpose(0, 1, 4, 2, 5, 3).reshape(n, c2, 2 * h1, 2 * w1)

    diff_y = h - 2 * h1
    diff_x = w - 2 * w1
    c2p = _round_up(c2, 8)
    x2_slab = _to_plane_slab(x2, cp=c2p, hp=hp, wl=wl, top=g, left=g,
                             a=a, m_row=m_row)
    x1u_slab = _to_plane_slab(x1u, cp=c2p, hp=hp, wl=wl,
                              top=g + diff_y // 2, left=g + diff_x // 2,
                              a=a, m_row=m_row)

    ii = jnp.arange(m_core)
    hh = ii // wl
    ww = ii % wl
    interior = (hh >= g) & (hh < g + h) & (ww >= g) & (ww < g + w)
    mask = interior.astype(jnp.float32)

    # ---- 2) StackConv (block_type='conv'): fused 3x3 conv + BN(eval) + ReLU ------
    # The first layer consumes the two slabs directly (pad + concat fused away).
    x_slabs = [x2_slab, x1u_slab]
    ch_parts = [c2, c2]
    for blk in blocks:
        d = int(blk["dilation"])
        taps = tuple(((kh - 1) * wl + (kw - 1)) * d
                     for kh in range(3) for kw in range(3))
        wgt = blk["w"]                                          # (Cout, Cin_l, 3, 3)
        cout = wgt.shape[0]
        w_groups = []
        off_c = 0
        for cpart in ch_parts:
            wpart = wgt[:, off_c:off_c + cpart]                 # (Cout, cpart, 3, 3)
            w_groups.append(wpart.transpose(2, 3, 0, 1).reshape(9, cout, cpart))
            off_c += cpart
        inv_std = 1.0 / jnp.sqrt(blk["var"].astype(jnp.float32) + eps)
        scale = blk["gamma"].astype(jnp.float32) * inv_std
        shift = blk["beta"].astype(jnp.float32) - blk["mean"].astype(jnp.float32) * scale
        y = _fused_conv(x_slabs, w_groups, scale, shift, mask,
                        taps=taps, plane_off=a, m_core=m_core, relu=True,
                        out_dtype=dtype)
        x_slabs = [y]
        ch_parts = [cout]

    # ---- 3) padded-plane slab -> NCHW, once ---------------------------------------
    out_c = ch_parts[0]
    plane = x_slabs[0][:, :out_c, a:a + m_core].reshape(n, out_c, hp, wl)
    return plane[:, :, g:g + h, g:g + w]


# ---------------------------------------------------------------------------
# Params + pure-JAX reference
# ---------------------------------------------------------------------------
def init_up_params(key, in_channels, out_channels, num_conv=2, dtype=jnp.float32):
    assert in_channels % 2 == 0
    c_up = in_channels // 2
    ks = jax.random.split(key, 2 + 5 * num_conv)
    bound = 1.0 / jnp.sqrt(in_channels * 4.0)
    up_w = jax.random.uniform(ks[0], (in_channels, c_up, 2, 2), dtype,
                              minval=-bound, maxval=bound)
    up_b = jax.random.uniform(ks[1], (c_up,), dtype, minval=-bound, maxval=bound)
    blocks = []
    c_in = in_channels
    idx = 2
    for _ in range(num_conv):
        c_out = out_channels
        bnd = 1.0 / jnp.sqrt(c_in * 9.0)
        w = jax.random.uniform(ks[idx], (c_out, c_in, 3, 3), dtype, minval=-bnd, maxval=bnd)
        gamma = jax.random.uniform(ks[idx + 1], (c_out,), dtype, minval=0.5, maxval=1.5)
        beta = 0.1 * jax.random.normal(ks[idx + 2], (c_out,), dtype)
        mean = 0.1 * jax.random.normal(ks[idx + 3], (c_out,), dtype)
        var = jax.random.uniform(ks[idx + 4], (c_out,), dtype, minval=0.5, maxval=1.5)
        blocks.append(dict(w=w, gamma=gamma, beta=beta, mean=mean, var=var, dilation=1))
        idx += 5
        c_in = c_out
    return dict(up_w=up_w, up_b=up_b, blocks=blocks)


def up_forward_ref(x1, x2, params, *, eps=1e-5):
    w, b = params["up_w"], params["up_b"]
    n, _, h1, w1 = x1.shape
    cout = w.shape[1]
    t = jnp.einsum("ncij,cokl->noikjl", x1, w)
    x1u = t.reshape(n, cout, 2 * h1, 2 * w1) + b[None, :, None, None]
    diff_y = x2.shape[2] - x1u.shape[2]
    diff_x = x2.shape[3] - x1u.shape[3]
    x1u = jnp.pad(x1u, ((0, 0), (0, 0),
                        (diff_y // 2, diff_y - diff_y // 2),
                        (diff_x // 2, diff_x - diff_x // 2)))
    x = jnp.concatenate([x2, x1u], axis=1)
    for blk in params["blocks"]:
        d = int(blk["dilation"])
        p = d
        y = jax.lax.conv_general_dilated(
            x, blk["w"], window_strides=(1, 1), padding=((p, p), (p, p)),
            rhs_dilation=(d, d), dimension_numbers=("NCHW", "OIHW", "NCHW"))
        inv = 1.0 / jnp.sqrt(blk["var"] + eps)
        y = (y - blk["mean"][None, :, None, None]) * (blk["gamma"] * inv)[None, :, None, None] \
            + blk["beta"][None, :, None, None]
        x = jnp.maximum(y, 0.0)
    return x


if __name__ == "__main__":
    key = jax.random.PRNGKey(0)
    k1, k2, kp = jax.random.split(key, 3)

    # Up(in_channels=4, out_channels=4, conv_kwargs=dict(block_type='conv',
    #    num_conv=2, kernel_size=[3,3], dilation=[1,1]))
    N, in_channels, out_channels = 2, 4, 4
    H1 = W1 = 8
    x1 = jax.random.normal(k1, (N, in_channels, H1, W1), dtype=jnp.float32)
    x2 = jax.random.normal(k2, (N, in_channels // 2, 2 * H1, 2 * W1), dtype=jnp.float32)

    params = init_up_params(kp, in_channels, out_channels, num_conv=2)

    y = up_forward(x1, x2, params)
    y = jax.block_until_ready(y)

    y_ref = up_forward_ref(x1, x2, params)
    assert y.shape == (N, out_channels, 2 * H1, 2 * W1), y.shape
    err = float(jnp.max(jnp.abs(y - y_ref)))
    assert jnp.allclose(y, y_ref, atol=1e-4, rtol=1e-4), err

    print("KERNEL_OK")
</pallas_src>

<mosaic_0001>
module attributes {stable_mosaic.version = 11 : i64} {
  func.func @_conv_tap_kernel(%arg0: i32, %arg1: i32, %arg2: memref<1x8x128xf32, #tpu.memory_space<vmem>>, %arg3: memref<1x8x8xf32, #tpu.memory_space<vmem>>, %arg4: memref<8x1xf32, #tpu.memory_space<vmem>>, %arg5: memref<8x1xf32, #tpu.memory_space<vmem>>, %arg6: memref<1x128xf32, #tpu.memory_space<vmem>>, %arg7: memref<1x8x128xf32, #tpu.memory_space<vmem>>) attributes {dimension_semantics = [#tpu.dimension_semantics<parallel>, #tpu.dimension_semantics<parallel>], iteration_bounds = array<i64: 2, 1>, scalar_prefetch = 0 : i64, scratch_operands = 0 : i64, tpu.core_type = #tpu.core_type<tc>, window_params = [{transform_indices = @transform_0, window_bounds = array<i64: 1, 8, 128>}, {transform_indices = @transform_1, window_bounds = array<i64: 1, 8, 8>}, {transform_indices = @transform_2, window_bounds = array<i64: 8, 1>}, {transform_indices = @transform_3, window_bounds = array<i64: 8, 1>}, {pipeline_mode = #tpu.pipeline_mode<synchronous>, transform_indices = @transform_4, window_bounds = array<i64: 1, 128>}, {transform_indices = @transform_5, window_bounds = array<i64: 1, 8, 128>}]} {
    %cst = arith.constant 0.000000e+00 : f32
    %0 = vector.broadcast %cst : f32 to vector<8x128xf32>
    %c0 = arith.constant 0 : index
    %c0_0 = arith.constant 0 : index
    %c0_1 = arith.constant 0 : index
    %1 = vector.load %arg2[%c0, %c0_0, %c0_1] : memref<1x8x128xf32, #tpu.memory_space<vmem>>, vector<1x8x128xf32>
    %2 = vector.shape_cast %1 : vector<1x8x128xf32> to vector<8x128xf32>
    %c0_2 = arith.constant 0 : index
    %c0_3 = arith.constant 0 : index
    %c0_4 = arith.constant 0 : index
    %3 = vector.load %arg3[%c0_2, %c0_3, %c0_4] : memref<1x8x8xf32, #tpu.memory_space<vmem>>, vector<1x8x8xf32>
    %4 = vector.shape_cast %3 : vector<1x8x8xf32> to vector<8x8xf32>
    %cst_5 = arith.constant dense<0.000000e+00> : vector<8x128xf32>
    %5 = tpu.matmul %4, %2, %cst_5 {dimension_numbers = #tpu.dot_dimension_numbers<[1], [0], [0], [1], [0, 0, 1, 1], [], []>} : vector<8x8xf32>, vector<8x128xf32>, vector<8x128xf32> -> vector<8x128xf32>
    %6 = arith.addf %0, %5 : vector<8x128xf32>
    %c0_6 = arith.constant 0 : index
    %c0_7 = arith.constant 0 : index
    %7 = vector.load %arg4[%c0_6, %c0_7] : memref<8x1xf32, #tpu.memory_space<vmem>>, vector<8x1xf32>
    %8 = vector.broadcast %7 : vector<8x1xf32> to vector<8x128xf32>
    %9 = arith.mulf %6, %8 : vector<8x128xf32>
    %c0_8 = arith.constant 0 : index
    %c0_9 = arith.constant 0 : index
    %10 = vector.load %arg5[%c0_8, %c0_9] : memref<8x1xf32, #tpu.memory_space<vmem>>, vector<8x1xf32>
    %11 = vector.broadcast %10 : vector<8x1xf32> to vector<8x128xf32>
    %12 = arith.addf %9, %11 : vector<8x128xf32>
    %c0_10 = arith.constant 0 : index
    %c0_11 = arith.constant 0 : index
    %13 = vector.load %arg6[%c0_10, %c0_11] : memref<1x128xf32, #tpu.memory_space<vmem>>, vector<1x128xf32>
    %14 = vector.broadcast %13 : vector<1x128xf32> to vector<8x128xf32>
    %15 = arith.mulf %12, %14 : vector<8x128xf32>
    %c0_12 = arith.constant 0 : index
    %c0_13 = arith.constant 0 : index
    %c0_14 = arith.constant 0 : index
    %16 = vector.load %arg7[%c0_12, %c0_13, %c0_14] : memref<1x8x128xf32, #tpu.memory_space<vmem>>, vector<1x8x128xf32>
    %17 = vector.shape_cast %16 : vector<1x8x128xf32> to vector<8x128xf32>
    %18 = vector.shape_cast %15 : vector<8x128xf32> to vector<1x8x128xf32>
    tpu.vector_store %arg7[%c0_12, %c0_13, %c0_14], %18 {strides = array<i32>} : memref<1x8x128xf32, #tpu.memory_space<vmem>>, vector<1x8x128xf32>,
    return
  }
  func.func @transform_0(%arg0: i32, %arg1: i32) -> (i32, i32, i32) {
    %c0_i32 = arith.constant 0 : i32
    %c0_i32_0 = arith.constant 0 : i32
    %c0_i32_1 = arith.constant 0 : i32
    return %arg0, %c0_i32, %c0_i32_0 : i32, i32, i32
  }
  func.func @transform_1(%arg0: i32, %arg1: i32) -> (i32, i32, i32) {
    %c0_i32 = arith.constant 0 : i32
    %c0_i32_0 = arith.constant 0 : i32
    %c0_i32_1 = arith.constant 0 : i32
    return %c0_i32, %arg1, %c0_i32_0 : i32, i32, i32
  }
  func.func @transform_2(%arg0: i32, %arg1: i32) -> (i32, i32) {
    %c0_i32 = arith.constant 0 : i32
    %c0_i32_0 = arith.constant 0 : i32
    return %arg1, %c0_i32 : i32, i32
  }
  func.func @transform_3(%arg0: i32, %arg1: i32) -> (i32, i32) {
    %c0_i32 = arith.constant 0 : i32
    %c0_i32_0 = arith.constant 0 : i32
    return %arg1, %c0_i32 : i32, i32
  }
  func.func @transform_4(%arg0: i32, %arg1: i32) -> (i32, i32) {
    %c0_i32 = arith.constant 0 : i32
    %c0_i32_0 = arith.constant 0 : i32
    %c0_i32_1 = arith.constant 0 : i32
    return %c0_i32, %c0_i32_0 : i32, i32
  }
  func.func @transform_5(%arg0: i32, %arg1: i32) -> (i32, i32, i32) {
    %c0_i32 = arith.constant 0 : i32
    %c0_i32_0 = arith.constant 0 : i32
    return %arg0, %arg1, %c0_i32 : i32, i32, i32
  }
}

</mosaic_0001>

<llo_original>
// kernel: tpu_custom_call.1
$region0: #{tpu_custom_call.1}
  #allocation0 [shape = 'u32[]', space=smem, size = 0x4, offset = 0x4, fixed_abs, tag = 'smem constant byte address 0x4 - core index']
  #allocation1 [shape = 'u32[144,128]{1,0:T(1,128)}', space=vmem, size = 0x12000, scoped, tag = 'internal scratch']
  %s0 = inlined_call_operand.vmem [shape: f32[2,8,128], index: 0, kind: input, shape index: {}]
  %s1 = inlined_call_operand.hbm [shape: f32[1,8,8], index: 1, kind: input, shape index: {}]
  %s2 = inlined_call_operand.vmem [shape: f32[8,1], index: 2, kind: input, shape index: {}]
  %s3 = inlined_call_operand.vmem [shape: f32[8,1], index: 3, kind: input, shape index: {}]
  %s4 = inlined_call_operand.vmem [shape: f32[1,128], index: 4, kind: input, shape index: {}]
  %s5 = inlined_call_operand.hbm [shape: f32[2,8,128], index: 5, kind: output, shape index: {}]
  %s6 = sld [smem:[#allocation0]]
  $region57: #{tpu_custom_call.1} parent=0
    _
  %s8 = ssub.s32 1, %s6
  %s9 = scalar_select 0, %s8, %s6
  $region1: #{tpu_custom_call.1} parent=0
    #allocation2 [shape = 'u8[4096]{0}', space=vmem, size = 0x1000, scoped, tag = 'input window, operand 1, single buffered']
    #allocation3 [shape = 's32[2]{0}', space=sflag, size = 0x8, scoped, tag = 'scoped memory for tpu_custom_call.1']
    #allocation4 [shape = 's32[2]{0}', space=sflag, size = 0x8, scoped, tag = 'scoped memory for tpu_custom_call.1']
    #allocation5 [shape = 'u8[8192]{0}', space=vmem, size = 0x2000, scoped, tag = 'output window, operand 0']
    %10 = vsyncpa [#allocation3], 0
    %11 = vsyncpa [#allocation4], 0
    %s12 = scalar_lea.sflag [#allocation4], 1
    %13 = vsyncpa %s12, 0
    loop: start=0, step=1, limit=4
    $region2: #{tpu_custom_call.1} parent=1 // loop_pre_header
      _
    $region3: #{tpu_custom_call.1} parent=1 // loop_header
      %s15 = sphi 0, %s19
      %p16 = scmp.ge.s32.totalorder %s15, 4
      %s22 = sphi 0, %s34
      %s23 = sphi 0, %s30
      %s24 = sphi 0, %s22
      %s25 = sphi 0, %s23
      %s26 = sphi 0, %s24
      %s27 = sphi 0, %s25
      %s37 = sphi 0, %s39
      %s40 = sphi 0, %s37
      %s41 = sphi 0, %s40
      %s57 = sphi 0, %s41
      %s63 = sphi 0, %s65
      %s66 = sphi 0, %s63
      %s67 = sphi 0, %s66
      %s83 = sphi 0, %s67
      %s89 = sphi 0, %s91
      %s92 = sphi 0, %s89
      %s93 = sphi 0, %s92
      %s109 = sphi 0, %s93
      %s115 = sphi 0, %s117
      %s118 = sphi 0, %s115
      %s119 = sphi 0, %s118
      %s135 = sphi 0, %s119
      %s139 = sphi 0, %s139
      %s141 = sphi 0, %s139
      %s142 = sphi 0, %s141
      %s156 = sphi 0, %s142
      %s164 = sphi 0, %s166
      %s167 = sphi 0, %s164
      %s168 = sphi 0, %s167
      %s184 = sphi 0, %s168
    $region4: #{tpu_custom_call.1} parent=1 // loop_header_branch
      %18 = sbr.rel (%p16) target = $region8
    $region5: #{tpu_custom_call.1} parent=1 // loop_body
      %s20 = ssub.s32 %s15, 1
      %s21 = ssub.s32 %s15, 2
      %s28 = sadd.s32 1, %s23
      %p29 = scmp.ge.s32.totalorder %s28, 1
      %s30 = scalar_select %p29, 0, %s28
      %s31 = sadd.s32 1, %s22
      %s32 = scalar_select %p29, %s31, %s22
      %p33 = scmp.ge.s32.totalorder %s32, 2
      %s34 = scalar_select %p33, 0, %s32
      %s35 = ssub.s32 %s22, %s34
      %p36 = scmp.eq.s32.totalorder %s35, 0
      %s38 = sadd.s32 %s37, 1
      %s39 = scalar_select %p36, %s37, %s38
      %p42 = pneg %p36
      %p43 = scmp.eq.s32.totalorder %s15, 1
      %p44 = por %p42, %p43
      %p45 = scmp.ne.s32.totalorder %s37, %s40
      %p46 = scmp.eq.s32.totalorder %s15, 0
      %p47 = por %p45, %p46
      %p48 = scmp.ne.s32.totalorder %s37, %s40
      %p49 = scmp.eq.s32.totalorder %s20, 1
      %p50 = por %p48, %p49
      %p51 = scmp.ne.s32.totalorder %s40, %s41
      %p52 = scmp.eq.s32.totalorder %s20, 0
      %p53 = por %p51, %p52
      %p54 = scmp.ne.s32.totalorder %s40, %s41
      %p55 = scmp.eq.s32.totalorder %s21, 1
      %p56 = por %p54, %p55
      %p58 = scmp.ne.s32.totalorder %s41, %s57
      %p59 = scmp.eq.s32.totalorder %s21, 0
      %p60 = por %p58, %p59
      %s61 = ssub.s32 %s23, %s30
      %p62 = scmp.eq.s32.totalorder %s61, 0
      %s64 = sadd.s32 %s63, 1
      %s65 = scalar_select %p62, %s63, %s64
      %p68 = pneg %p62
      %p69 = scmp.eq.s32.totalorder %s15, 1
      %p70 = por %p68, %p69
      %p71 = scmp.ne.s32.totalorder %s63, %s66
      %p72 = scmp.eq.s32.totalorder %s15, 0
      %p73 = por %p71, %p72
      %p74 = scmp.ne.s32.totalorder %s63, %s66
      %p75 = scmp.eq.s32.totalorder %s20, 1
      %p76 = por %p74, %p75
      %p77 = scmp.ne.s32.totalorder %s66, %s67
      %p78 = scmp.eq.s32.totalorder %s20, 0
      %p79 = por %p77, %p78
      %p80 = scmp.ne.s32.totalorder %s66, %s67
      %p81 = scmp.eq.s32.totalorder %s21, 1
      %p82 = por %p80, %p81
      %p84 = scmp.ne.s32.totalorder %s67, %s83
      %p85 = scmp.eq.s32.totalorder %s21, 0
      %p86 = por %p84, %p85
      %s87 = ssub.s32 %s23, %s30
      %p88 = scmp.eq.s32.totalorder %s87, 0
      %s90 = sadd.s32 %s89, 1
      %s91 = scalar_select %p88, %s89, %s90
      %p94 = pneg %p88
      %p95 = scmp.eq.s32.totalorder %s15, 1
      %p96 = por %p94, %p95
      %p97 = scmp.ne.s32.totalorder %s89, %s92
      %p98 = scmp.eq.s32.totalorder %s15, 0
      %p99 = por %p97, %p98
      %p100 = scmp.ne.s32.totalorder %s89, %s92
      %p101 = scmp.eq.s32.totalorder %s20, 1
      %p102 = por %p100, %p101
      %p103 = scmp.ne.s32.totalorder %s92, %s93
      %p104 = scmp.eq.s32.totalorder %s20, 0
      %p105 = por %p103, %p104
      %p106 = scmp.ne.s32.totalorder %s92, %s93
      %p107 = scmp.eq.s32.totalorder %s21, 1
      %p108 = por %p106, %p107
      %p110 = scmp.ne.s32.totalorder %s93, %s109
      %p111 = scmp.eq.s32.totalorder %s21, 0
      %p112 = por %p110, %p111
      %s113 = ssub.s32 %s23, %s30
      %p114 = scmp.eq.s32.totalorder %s113, 0
      %s116 = sadd.s32 %s115, 1
      %s117 = scalar_select %p114, %s115, %s116
      %p120 = pneg %p114
      %p121 = scmp.eq.s32.totalorder %s15, 1
      %p122 = por %p120, %p121
      %p123 = scmp.ne.s32.totalorder %s115, %s118
      %p124 = scmp.eq.s32.totalorder %s15, 0
      %p125 = por %p123, %p124
      %p126 = scmp.ne.s32.totalorder %s115, %s118
      %p127 = scmp.eq.s32.totalorder %s20, 1
      %p128 = por %p126, %p127
      %p129 = scmp.ne.s32.totalorder %s118, %s119
      %p130 = scmp.eq.s32.totalorder %s20, 0
      %p131 = por %p129, %p130
      %p132 = scmp.ne.s32.totalorder %s118, %s119
      %p133 = scmp.eq.s32.totalorder %s21, 1
      %p134 = por %p132, %p133
      %p136 = scmp.ne.s32.totalorder %s119, %s135
      %p137 = scmp.eq.s32.totalorder %s21, 0
      %p138 = por %p136, %p137
      %s140 = sadd.s32 %s139, 1
      %p143 = scmp.eq.s32.totalorder %s15, 1
      %p144 = scmp.ne.s32.totalorder %s139, %s141
      %p145 = scmp.eq.s32.totalorder %s15, 0
      %p146 = por %p144, %p145
      %p147 = scmp.ne.s32.totalorder %s139, %s141
      %p148 = scmp.eq.s32.totalorder %s20, 1
      %p149 = por %p147, %p148
      %p150 = scmp.ne.s32.totalorder %s141, %s142
      %p151 = scmp.eq.s32.totalorder %s20, 0
      %p152 = por %p150, %p151
      %p153 = scmp.ne.s32.totalorder %s141, %s142
      %p154 = scmp.eq.s32.totalorder %s21, 1
      %p155 = por %p153, %p154
      %p157 = scmp.ne.s32.totalorder %s142, %s156
      %p158 = scmp.eq.s32.totalorder %s21, 0
      %p159 = por %p157, %p158
      %s160 = ssub.s32 %s22, %s34
      %s161 = ssub.s32 %s23, %s30
      %s162 = sor.u32 %s160, %s161
      %p163 = scmp.eq.s32.totalorder %s162, 0
      %s165 = sadd.s32 %s164, 1
      %s166 = scalar_select %p163, %s164, %s165
      %p169 = pneg %p163
      %p170 = scmp.eq.s32.totalorder %s15, 1
      %p171 = por %p169, %p170
      %p172 = scmp.ne.s32.totalorder %s164, %s167
      %p173 = scmp.eq.s32.totalorder %s15, 0
      %p174 = por %p172, %p173
      %p175 = scmp.ne.s32.totalorder %s164, %s167
      %p176 = scmp.eq.s32.totalorder %s20, 1
      %p177 = por %p175, %p176
      %p178 = scmp.ne.s32.totalorder %s167, %s168
      %p179 = scmp.eq.s32.totalorder %s20, 0
      %p180 = por %p178, %p179
      %p181 = scmp.ne.s32.totalorder %s167, %s168
      %p182 = scmp.eq.s32.totalorder %s21, 1
      %p183 = por %p181, %p182
      %p185 = scmp.ne.s32.totalorder %s168, %s184
      %p186 = scmp.eq.s32.totalorder %s21, 0
      %p187 = por %p185, %p186
      %p188 = scmp.le.s32.totalorder 1, %s15
      %p189 = scmp.lt.s32.totalorder %s15, 3
      %p190 = pnand %p188, %p189
      %p191 = pneg %p190
      // Predicated region
      $region9: #{tpu_custom_call.1} parent=5 // pred_check
        _
      $region10: #{tpu_custom_call.1} parent=5 // pred_check_branch
        %193 = sbr.rel (%p190) target = $region12
      $region11: #{tpu_custom_call.1} parent=5 // pred_region
        %s194 = ssub.s32 %s15, 1
        // Predicated region
        $region13: #{tpu_custom_call.1} parent=11 // pred_check
          %p195 = pneg %p79
        $region14: #{tpu_custom_call.1} parent=11 // pred_check_branch
          %197 = sbr.rel (%p195) target = $region16
        $region15: #{tpu_custom_call.1} parent=11 // pred_region
          %s199 = ssub.s32 128, 128
          %200 = vsyncadd [#allocation3], %s199
          %s201 = smul.addr %s25, 128
          %s202 = scalar_lea.hbm %s1, %s201
          %s204 = sshll.u32 [#allocation2], 4
          %s205 = int_to_ptr.vmem [resolvable:$true] %s204
          %207 = dma.hbm_to_vmem [thread:$0]  %s202, 128, %s205, [#allocation3]
        $region16: #{tpu_custom_call.1} parent=11 // pred_fallthru
          _
        // Predicated region
        $region17: #{tpu_custom_call.1} parent=11 // pred_check
          %p208 = pneg %p105
        $region18: #{tpu_custom_call.1} parent=11 // pred_check_branch
          %210 = sbr.rel (%p208) target = $region20
        $region19: #{tpu_custom_call.1} parent=11 // pred_region
          %p211 = scmp.lt.s32.totalorder %s25, 0
          %s212 = scalar_select %p211, %s25, 0
          %s213 = smul.addr %s212, 8
          %s214 = scalar_lea.vmem %s2, %s213
        $region20: #{tpu_custom_call.1} parent=11 // pred_fallthru
          _
        // Predicated region
        $region21: #{tpu_custom_call.1} parent=11 // pred_check
          %p215 = pneg %p131
        $region22: #{tpu_custom_call.1} parent=11 // pred_check_branch
          %217 = sbr.rel (%p215) target = $region24
        $region23: #{tpu_custom_call.1} parent=11 // pred_region
          %p218 = scmp.lt.s32.totalorder %s25, 0
          %s219 = scalar_select %p218, %s25, 0
          %s220 = smul.addr %s219, 8
          %s221 = scalar_lea.vmem %s3, %s220
        $region24: #{tpu_custom_call.1} parent=11 // pred_fallthru
          _
        // Predicated region
        $region25: #{tpu_custom_call.1} parent=11 // pred_check
          %p222 = pneg %p152
        $region26: #{tpu_custom_call.1} parent=11 // pred_check_branch
          %224 = sbr.rel (%p222) target = $region28
        $region27: #{tpu_custom_call.1} parent=11 // pred_region
          _
        $region28: #{tpu_custom_call.1} parent=11 // pred_fallthru
          _
      $region12: #{tpu_custom_call.1} parent=5 // pred_fallthru
        _
      %p225 = scmp.lt.s32.totalorder %s15, 2
      // Predicated region
      $region29: #{tpu_custom_call.1} parent=5 // pred_check
        %p226 = pneg %p225
      $region30: #{tpu_custom_call.1} parent=5 // pred_check_branch
        %228 = sbr.rel (%p226) target = $region32
      $region31: #{tpu_custom_call.1} parent=5 // pred_region
        // Predicated region
        $region33: #{tpu_custom_call.1} parent=31 // pred_check
          %p229 = pneg %p47
        $region34: #{tpu_custom_call.1} parent=31 // pred_check_branch
          %231 = sbr.rel (%p229) target = $region36
        $region35: #{tpu_custom_call.1} parent=31 // pred_region
          %p232 = scmp.lt.s32.totalorder %s22, 1
          %s233 = scalar_select %p232, %s22, 1
          %s234 = smul.addr %s233, 8
          %s235 = scalar_lea.vmem %s0, %s234
        $region36: #{tpu_custom_call.1} parent=31 // pred_fallthru
          _
      $region32: #{tpu_custom_call.1} parent=5 // pred_fallthru
        _
      %p236 = scmp.le.s32.totalorder 1, %s15
      %p237 = scmp.lt.s32.totalorder %s15, 3
      %p238 = pnand %p236, %p237
      %p239 = pneg %p238
      // Predicated region
      $region37: #{tpu_custom_call.1} parent=5 // pred_check
        _
      $region38: #{tpu_custom_call.1} parent=5 // pred_check_branch
        %241 = sbr.rel (%p238) target = $region40
      $region39: #{tpu_custom_call.1} parent=5 // pred_region
        %s242 = ssub.s32 %s15, 1
        // Predicated region
        $region41: #{tpu_custom_call.1} parent=39 // pred_check
          %p243 = pneg %p79
        $region42: #{tpu_custom_call.1} parent=39 // pred_check_branch
          %245 = sbr.rel (%p243) target = $region44
        $region43: #{tpu_custom_call.1} parent=39 // pred_region
          %246 = dma.done [#allocation3], 128
        $region44: #{tpu_custom_call.1} parent=39 // pred_fallthru
          _
        %p247 = scmp.lt.s32.totalorder %s24, 1
        %s248 = scalar_select %p247, %s24, 1
        %s249 = smul.addr %s248, 8
        %s250 = scalar_lea.vmem %s0, %s249
        %p251 = pneg %p53
        %p252 = pneg %p50
        %p253 = pneg %p79
        %p254 = pneg %p76
        %p255 = scmp.lt.s32.totalorder %s25, 0
        %s256 = scalar_select %p255, %s25, 0
        %s257 = smul.addr %s256, 8
        %s258 = scalar_lea.vmem %s2, %s257
        %p259 = pneg %p105
        %p260 = pneg %p102
        %p261 = scmp.lt.s32.totalorder %s25, 0
        %s262 = scalar_select %p261, %s25, 0
        %s263 = smul.addr %s262, 8
        %s264 = scalar_lea.vmem %s3, %s263
        %p265 = pneg %p131
        %p266 = pneg %p128
        %p267 = pneg %p152
        %p268 = pneg %p149
        %p269 = pneg %p180
        %p270 = pneg %p177
        %s271 = sand.u32 %s167, 1
        %s272 = scalar_lea.sflag [#allocation4], %s271
        %s273 = sand.u32 %s167, 1
        %s274 = smul.addr %s273, 8
        %s275 = scalar_lea.vmem [#allocation5], %s274
        %p276 = scmp.lt.s32.totalorder %s24, 1
        %s277 = scalar_select %p276, %s24, 1
        %s278 = smul.addr %s277, 8
        %s279 = scalar_lea.vmem %s0, %s278
        %p280 = scmp.lt.s32.totalorder %s25, 0
        %s281 = scalar_select %p280, %s25, 0
        %s282 = smul.addr %s281, 8
        %s283 = scalar_lea.vmem %s2, %s282
        %p284 = scmp.lt.s32.totalorder %s25, 0
        %s285 = scalar_select %p284, %s25, 0
        %s286 = smul.addr %s285, 8
        %s287 = scalar_lea.vmem %s3, %s286
        %v288 = vld [vmem:[%s279] sm:$0xff]
        %v289 = vld [vmem:[#allocation2] sm:$0xff]
        %vm290 = vcmask 64512
        %v292 = vsel %vm290, %v289, 0
        %294 = vmatprep.subr.mxu0 0.0
        %295 = vmatpush1.msra.mxu0 0.0
        %296 = vmatprep.subr.mxu0 0.0
        %297 = vmatpush1.msra.mxu0 0.0
        %298 = vmatprep.subr.mxu0 0.0
        %299 = vmatpush1.msra.mxu0 0.0
        %300 = vmatprep.subr.mxu0 0.0
        %301 = vmatpush1.msra.mxu0 0.0
        %302 = vmatprep.subr.mxu0 0.0
        %303 = vmatpush1.msra.mxu0 0.0
        %304 = vmatprep.subr.mxu0 0.0
        %305 = vmatpush1.msra.mxu0 0.0
        %306 = vmatprep.subr.mxu0 0.0
        %307 = vmatpush1.msra.mxu0 0.0
        %308 = vmatprep.subr.mxu0 0.0
        %309 = vmatpush1.msra.mxu0 0.0
        %310 = vmatprep.subr.mxu0 0.0
        %311 = vmatpush1.msra.mxu0 0.0
        %312 = vmatprep.subr.mxu0 0.0
        %313 = vmatpush1.msra.mxu0 0.0
        %314 = vmatprep.subr.mxu0 0.0
        %315 = vmatpush1.msra.mxu0 0.0
        %316 = vmatprep.subr.mxu0 0.0
        %317 = vmatpush1.msra.mxu0 0.0
        %318 = vmatprep.subr.mxu0 0.0
        %319 = vmatpush1.msra.mxu0 0.0
        %320 = vmatprep.subr.mxu0 0.0
        %321 = vmatpush1.msra.mxu0 0.0
        %322 = vmatprep.subr.mxu0 0.0
        %323 = vmatpush1.msra.mxu0 0.0
        %324 = vmatprep.subr.mxu0 0.0
        %325 = vmatpush1.msra.mxu0 %v288
        %326 = vmatprep.subr.mxu0 0.0
        %327 = vmatpush2.msra.mxu0 0.0
        %328 = vmatprep.subr.mxu0 0.0
        %329 = vmatpush2.msra.mxu0 0.0
        %330 = vmatprep.subr.mxu0 0.0
        %331 = vmatpush2.msra.mxu0 0.0
        %332 = vmatprep.subr.mxu0 0.0
        %333 = vmatpush2.msra.mxu0 0.0
        %334 = vmatprep.subr.mxu0 0.0
        %335 = vmatpush2.msra.mxu0 0.0
        %336 = vmatprep.subr.mxu0 0.0
        %337 = vmatpush2.msra.mxu0 0.0
        %338 = vmatprep.subr.mxu0 0.0
        %339 = vmatpush2.msra.mxu0 0.0
        %340 = vmatprep.subr.mxu0 0.0
        %341 = vmatpush2.msra.mxu0 0.0
        %342 = vmatprep.subr.mxu0 0.0
        %343 = vmatpush2.msra.mxu0 0.0
        %344 = vmatprep.subr.mxu0 0.0
        %345 = vmatpush2.msra.mxu0 0.0
        %346 = vmatprep.subr.mxu0 0.0
        %347 = vmatpush2.msra.mxu0 0.0
        %348 = vmatprep.subr.mxu0 0.0
        %349 = vmatpush2.msra.mxu0 0.0
        %350 = vmatprep.subr.mxu0 0.0
        %351 = vmatpush2.msra.mxu0 0.0
        %352 = vmatprep.subr.mxu0 0.0
        %353 = vmatpush2.msra.mxu0 0.0
        %354 = vmatprep.subr.mxu0 0.0
        %355 = vmatpush2.msra.mxu0 0.0
        %356 = vmatprep.subr.mxu0 0.0
        %357 = vmatpush2.msra.mxu0 0.0
        %358 = vmatprep.mubr.f32.mxu0 0.0
        %359 = vmatmul.mubr.f32.gmra.mxu0 %v292
        %v360 = vpop.f32.mrf.mxu0
        %v361 = vadd.f32 0.0, %v360
        %v362 = vpop.f32.mrf.mxu0
        %363 = vdwg.mxu0
        %v364 = vld [vmem:[%s283] sm:$0xff]
        %366 = vset.pattern.permute.xlu0 0
        %367 = vperm.xlu0 %366, %v364
        %v368 = vpop.permute.xlu0 %367
        %v370 = vmul.f32 %v361, %v368
        %v371 = vld [vmem:[%s287] sm:$0xff]
        %373 = vset.pattern.permute.xlu0 0
        %374 = vperm.xlu0 %373, %v371
        %v375 = vpop.permute.xlu0 %374
        %v377 = vadd.f32 %v370, %v375
        %v378 = vld [vmem:[%s4] sm:$0x1]
        %v380 = vlaneseq
        %v381 = vshrl.u32 %v380, 7
        %v382 = vsub.s32 0, %v381
        %v383 = vrot.slane %v378, %v382
        %v385 = vmul.f32 %v377, %v383
        %386 = vst [vmem:[%s275] sm:$0xff] %v385
        %s387 = sand.u32 %s167, 1
        %s388 = scalar_lea.sflag [#allocation4], %s387
        %s389 = sand.u32 %s167, 1
        %s390 = smul.addr %s389, 8
        %s391 = scalar_lea.vmem [#allocation5], %s390
        // Predicated region
        $region45: #{tpu_custom_call.1} parent=39 // pred_check
          %p392 = pneg %p177
        $region46: #{tpu_custom_call.1} parent=39 // pred_check_branch
          %394 = sbr.rel (%p392) target = $region48
        $region47: #{tpu_custom_call.1} parent=39 // pred_region
          %s396 = ssub.s32 128, 128
          %397 = vsyncadd %s388, %s396
          %s398 = sadd.s32 %s25, %s24
          %s399 = smul.addr %s398, 128
          %s400 = scalar_lea.hbm %s5, %s399
          %s402 = sshll.u32 %s391, 4
          %s403 = int_to_ptr.vmem [resolvable:$true] %s402
          %405 = dma.vmem_to_hbm [thread:$0]  %s403, 128, %s400, %s388
        $region48: #{tpu_custom_call.1} parent=39 // pred_fallthru
          _
      $region40: #{tpu_custom_call.1} parent=5 // pred_fallthru
        _
      %p406 = scmp.le.s32.totalorder 2, %s15
      // Predicated region
      $region49: #{tpu_custom_call.1} parent=5 // pred_check
        %p407 = pneg %p406
      $region50: #{tpu_custom_call.1} parent=5 // pred_check_branch
        %409 = sbr.rel (%p407) target = $region52
      $region51: #{tpu_custom_call.1} parent=5 // pred_region
        %s410 = ssub.s32 %s15, 2
        // Predicated region
        $region53: #{tpu_custom_call.1} parent=51 // pred_check
          %p411 = pneg %p183
        $region54: #{tpu_custom_call.1} parent=51 // pred_check_branch
          %413 = sbr.rel (%p411) target = $region56
        $region55: #{tpu_custom_call.1} parent=51 // pred_region
          %s414 = sand.u32 %s168, 1
          %s415 = scalar_lea.sflag [#allocation4], %s414
          %s416 = sand.u32 %s168, 1
          %s417 = smul.addr %s416, 8
          %s418 = scalar_lea.vmem [#allocation5], %s417
          %419 = dma.done %s415, 128
        $region56: #{tpu_custom_call.1} parent=51 // pred_fallthru
          _
      $region52: #{tpu_custom_call.1} parent=5 // pred_fallthru
        _
    $region6: #{tpu_custom_call.1} parent=1 // loop_footer
      %s19 = sadd.s32 1, %s15
    $region7: #{tpu_custom_call.1} parent=1 // loop_footer_branch
      %14 = sbr.rel target = $region3
    $region8: #{tpu_custom_call.1} parent=1 // loop_exit
      _
    %420 = vsyncpa [#allocation3], 1
    %s421 = scalar_lea.sflag [#allocation3], 1
    %422 = vsyncpa %s421, 1
    %423 = vsyncpa [#allocation4], 1
    %s424 = scalar_lea.sflag [#allocation4], 1
    %425 = vsyncpa %s424, 1

</llo_original>
